<compile_context>
chip_gen: v7x
topology: tpu7x:2x2x1
jax: 0.10.0
libtpu: 0.0.40
codegen_flags: <defaults>
</compile_context>

<pallas_src>
import jax
import jax.numpy as jnp
from jax.experimental import pallas as pl
from jax.experimental.pallas import tpu as pltpu


def _contract(w2, b2, x, use_vpu):
    """(O, Cin) @ (Cin, T) + (O, 1) -> (O, T), f32 accumulation."""
    cin = x.shape[0]
    if use_vpu:
        # VPU broadcast-FMA path for tiny channel counts (MXU would be <1%
        # utilized).  Balanced-tree sum; bias folded into the first term.
        terms = [w2[:, c:c + 1] * x[c:c + 1, :] for c in range(cin)]
        terms[0] = terms[0] + b2
        while len(terms) > 1:
            nxt = [terms[i] + terms[i + 1] for i in range(0, len(terms) - 1, 2)]
            if len(terms) % 2:
                nxt.append(terms[-1])
            terms = nxt
        return terms[0]
    return jnp.dot(w2, x, preferred_element_type=jnp.float32) + b2


def _gau_kernel(x_ref, w_ref, b_ref, m_ref, v_ref):
    # x_ref:        (Nb, Cin, T)    tile of pixels (lanes = spatial)
    # w_ref:        (2*Cout, Cin)   stacked [w_m; w_v], resident, f32
    # b_ref:        (2*Cout, 1)     stacked [b_m; b_v], resident, f32
    # m_ref, v_ref: (Nb, Cout, T)
    nb, cin, _ = x_ref.shape
    cout = m_ref.shape[1]

    w = w_ref[...].astype(jnp.float32)
    b = b_ref[...].astype(jnp.float32)

    use_vpu = (cin <= 8) and (cin * 2 * cout <= 256)
    split_aligned = (cout % 8 == 0)   # sublane-tile-aligned split of stacked y

    for bi in range(nb):
        x = x_ref[bi].astype(jnp.float32)           # (Cin, T), f32 accumulate
        if split_aligned:
            y = _contract(w, b, x, use_vpu)         # (2*Cout, T)
            m_ref[bi] = y[:cout, :].astype(m_ref.dtype)
            v_ref[bi] = y[cout:, :].astype(v_ref.dtype)
        else:
            # Avoid an unaligned sublane split of the big (2*Cout, T) tile;
            # slicing the tiny weight instead is free.
            m_ref[bi] = _contract(w[:cout], b[:cout], x, use_vpu).astype(m_ref.dtype)
            v_ref[bi] = _contract(w[cout:], b[cout:], x, use_vpu).astype(v_ref.dtype)


def gau_block(x_nchw, w_m, b_m, w_v, b_v, *, target_lanes=32768):
    """Applies two fused 1x1 convs (m, v) to NCHW input x.

    w_m, w_v: (Cout, Cin)  (PyTorch Conv2d weight (Cout, Cin, 1, 1) squeezed)
    b_m, b_v: (Cout,)
    Returns (m, v), both NCHW, same dtype as x.
    """
    N, Cin, H, W = x_nchw.shape
    Cout = w_m.shape[0]
    HW = H * W

    # NCHW -> (N, Cin, H*W): pure contiguous reshape, no transpose / no pad.
    x_rows = x_nchw.reshape(N, Cin, HW)

    # ---- Tile selection (bandwidth-bound op: make each grid step big) ----
    if HW >= target_lanes:
        # Lane-dense tile, multiple of 128; ragged last tile handled by
        # Pallas store-masking (grid uses cdiv) -> no wrapper pad / slice.
        tile_hw = (target_lanes // 128) * 128
        nb = 1
    else:
        # Small spatial extent: take the whole row (full-extent last dim is
        # always legal) and block several batch rows per step instead.
        tile_hw = HW
        nb = max(1, target_lanes // max(HW, 1))
        nb = min(nb, N)
        if N >= 2:
            # Keep >= 2 parallel grid steps so v7x megacore (2 TCs) is used.
            nb = min(nb, max(1, N // 2))
        while N % nb != 0:   # keep batch blocks exact (no ragged batch dim)
            nb -= 1

    grid = (pl.cdiv(N, nb), pl.cdiv(HW, tile_hw))

    # Fuse the two branches into one stacked resident weight / bias (f32).
    w_mv = jnp.concatenate([w_m, w_v], axis=0).astype(jnp.float32)          # (2*Cout, Cin)
    b_mv = jnp.concatenate([b_m, b_v], axis=0).reshape(2 * Cout, 1).astype(jnp.float32)

    itemsize = jnp.dtype(x_rows.dtype).itemsize
    flops = 2 * N * HW * Cin * (2 * Cout)
    bytes_accessed = (N * Cin * HW * itemsize            # x
                      + 2 * N * Cout * HW * itemsize     # m, v
                      + w_mv.size * 4 + b_mv.size * 4)

    # ---- VMEM budgeting (generation-aware) ----
    # double-buffered x tile + 2 double-buffered output tiles, plus f32
    # intermediates (x cast + stacked y) and the tiny resident weights.
    io_per_step = nb * tile_hw * (Cin + 2 * Cout) * itemsize
    vmem_est = (2 * io_per_step
                + (Cin + 2 * Cout) * tile_hw * 4
                + (w_mv.size + b_mv.size) * 4)
    compiler_kwargs = dict(dimension_semantics=("parallel", "parallel"))
    # v5e's default scoped VMEM is only ~16 MiB -> raise explicitly once the
    # estimate gets anywhere close; never request more than 56 MiB so the
    # same kernel fits v7x's 64 MiB physical VMEM with headroom.
    if vmem_est > 12 * 1024 * 1024:
        compiler_kwargs["vmem_limit_bytes"] = int(
            min(max(2 * vmem_est, 32 * 1024 * 1024), 56 * 1024 * 1024))

    m_rows, v_rows = pl.pallas_call(
        _gau_kernel,
        out_shape=(
            jax.ShapeDtypeStruct((N, Cout, HW), x_rows.dtype),
            jax.ShapeDtypeStruct((N, Cout, HW), x_rows.dtype),
        ),
        grid_spec=pltpu.PrefetchScalarGridSpec(
            num_scalar_prefetch=0,
            grid=grid,
            in_specs=[
                pl.BlockSpec((nb, Cin, tile_hw), lambda b, t: (b, 0, t)),
                pl.BlockSpec((2 * Cout, Cin), lambda b, t: (0, 0)),   # resident
                pl.BlockSpec((2 * Cout, 1), lambda b, t: (0, 0)),     # resident
            ],
            out_specs=[
                pl.BlockSpec((nb, Cout, tile_hw), lambda b, t: (b, 0, t)),
                pl.BlockSpec((nb, Cout, tile_hw), lambda b, t: (b, 0, t)),
            ],
        ),
        compiler_params=pltpu.CompilerParams(**compiler_kwargs),
        cost_estimate=pl.CostEstimate(
            flops=int(flops), transcendentals=0,
            bytes_accessed=int(bytes_accessed)),
    )(x_rows, w_mv, b_mv)

    # (N, Cout, H*W) -> NCHW: free reshapes, no slicing (no padding was added).
    return m_rows.reshape(N, Cout, H, W), v_rows.reshape(N, Cout, H, W)


if __name__ == "__main__":
    key = jax.random.PRNGKey(0)
    N, Cin, Cout, H, W = 2, 4, 8, 16, 16

    k_x, k_wm, k_bm, k_wv, k_bv = jax.random.split(key, 5)
    x = jax.random.normal(k_x, (N, Cin, H, W), dtype=jnp.float32)

    # Deterministic synthetic params (shapes match nn.Conv2d(Cin, Cout, 1)).
    bound = 1.0 / jnp.sqrt(jnp.float32(Cin))
    w_m = jax.random.uniform(k_wm, (Cout, Cin), minval=-bound, maxval=bound)
    b_m = jax.random.uniform(k_bm, (Cout,), minval=-bound, maxval=bound)
    w_v = jax.random.uniform(k_wv, (Cout, Cin), minval=-bound, maxval=bound)
    b_v = jax.random.uniform(k_bv, (Cout,), minval=-bound, maxval=bound)

    def ref(xx):
        m_r = jnp.einsum("nchw,oc->nohw", xx, w_m) + b_m[None, :, None, None]
        v_r = jnp.einsum("nchw,oc->nohw", xx, w_v) + b_v[None, :, None, None]
        return m_r, v_r

    # Main small-shape run (H*W small -> batch-blocked path).
    m, v = gau_block(x, w_m, b_m, w_v, b_v)
    jax.block_until_ready((m, v))
    m_ref, v_ref = ref(x)
    assert m.shape == (N, Cout, H, W) and v.shape == (N, Cout, H, W)
    assert jnp.allclose(m, m_ref, atol=1e-5), "m branch mismatch"
    assert jnp.allclose(v, v_ref, atol=1e-5), "v branch mismatch"

    # Exercise the spatially-tiled path with a ragged last tile
    # (HW = 324 with 128-lane tiles -> masked edge block, no wrapper pad).
    H2, W2 = 18, 18
    x2 = jax.random.normal(jax.random.PRNGKey(1), (N, Cin, H2, W2), dtype=jnp.float32)
    m2, v2 = gau_block(x2, w_m, b_m, w_v, b_v, target_lanes=128)
    jax.block_until_ready((m2, v2))
    m2_ref, v2_ref = ref(x2)
    assert jnp.allclose(m2, m2_ref, atol=1e-5), "m branch mismatch (ragged tile)"
    assert jnp.allclose(v2, v2_ref, atol=1e-5), "v branch mismatch (ragged tile)"

    print("KERNEL_OK")
</pallas_src>

<mosaic_0001>
module attributes {stable_mosaic.version = 11 : i64} {
  func.func @_gau_kernel(%arg0: i32, %arg1: i32, %arg2: memref<1x4x256xf32, #tpu.memory_space<vmem>>, %arg3: memref<16x4xf32, #tpu.memory_space<vmem>>, %arg4: memref<16x1xf32, #tpu.memory_space<vmem>>, %arg5: memref<1x8x256xf32, #tpu.memory_space<vmem>>, %arg6: memref<1x8x256xf32, #tpu.memory_space<vmem>>) attributes {dimension_semantics = [#tpu.dimension_semantics<parallel>, #tpu.dimension_semantics<parallel>], iteration_bounds = array<i64: 2, 1>, scalar_prefetch = 0 : i64, scratch_operands = 0 : i64, tpu.core_type = #tpu.core_type<tc>, window_params = [{transform_indices = @transform_0, window_bounds = array<i64: 1, 4, 256>}, {pipeline_mode = #tpu.pipeline_mode<synchronous>, transform_indices = @transform_1, window_bounds = array<i64: 16, 4>}, {pipeline_mode = #tpu.pipeline_mode<synchronous>, transform_indices = @transform_2, window_bounds = array<i64: 16, 1>}, {transform_indices = @transform_3, window_bounds = array<i64: 1, 8, 256>}, {transform_indices = @transform_4, window_bounds = array<i64: 1, 8, 256>}]} {
    %c0 = arith.constant 0 : index
    %c0_0 = arith.constant 0 : index
    %0 = vector.load %arg3[%c0, %c0_0] : memref<16x4xf32, #tpu.memory_space<vmem>>, vector<16x4xf32>
    %c0_1 = arith.constant 0 : index
    %c0_2 = arith.constant 0 : index
    %1 = vector.load %arg4[%c0_1, %c0_2] : memref<16x1xf32, #tpu.memory_space<vmem>>, vector<16x1xf32>
    %c0_3 = arith.constant 0 : index
    %c0_4 = arith.constant 0 : index
    %c0_5 = arith.constant 0 : index
    %2 = vector.load %arg2[%c0_3, %c0_4, %c0_5] : memref<1x4x256xf32, #tpu.memory_space<vmem>>, vector<1x4x256xf32>
    %3 = vector.shape_cast %2 : vector<1x4x256xf32> to vector<4x256xf32>
    %4 = vector.extract_strided_slice %0 {offsets = [0, 0], sizes = [16, 1], strides = [1, 1]} : vector<16x4xf32> to vector<16x1xf32>
    %5 = vector.extract_strided_slice %3 {offsets = [0, 0], sizes = [1, 256], strides = [1, 1]} : vector<4x256xf32> to vector<1x256xf32>
    %6 = vector.broadcast %4 : vector<16x1xf32> to vector<16x256xf32>
    %7 = vector.broadcast %5 : vector<1x256xf32> to vector<16x256xf32>
    %8 = arith.mulf %6, %7 : vector<16x256xf32>
    %9 = vector.extract_strided_slice %0 {offsets = [0, 1], sizes = [16, 1], strides = [1, 1]} : vector<16x4xf32> to vector<16x1xf32>
    %10 = vector.extract_strided_slice %3 {offsets = [1, 0], sizes = [1, 256], strides = [1, 1]} : vector<4x256xf32> to vector<1x256xf32>
    %11 = vector.broadcast %9 : vector<16x1xf32> to vector<16x256xf32>
    %12 = vector.broadcast %10 : vector<1x256xf32> to vector<16x256xf32>
    %13 = arith.mulf %11, %12 : vector<16x256xf32>
    %14 = vector.extract_strided_slice %0 {offsets = [0, 2], sizes = [16, 1], strides = [1, 1]} : vector<16x4xf32> to vector<16x1xf32>
    %15 = vector.extract_strided_slice %3 {offsets = [2, 0], sizes = [1, 256], strides = [1, 1]} : vector<4x256xf32> to vector<1x256xf32>
    %16 = vector.broadcast %14 : vector<16x1xf32> to vector<16x256xf32>
    %17 = vector.broadcast %15 : vector<1x256xf32> to vector<16x256xf32>
    %18 = arith.mulf %16, %17 : vector<16x256xf32>
    %19 = vector.extract_strided_slice %0 {offsets = [0, 3], sizes = [16, 1], strides = [1, 1]} : vector<16x4xf32> to vector<16x1xf32>
    %20 = vector.extract_strided_slice %3 {offsets = [3, 0], sizes = [1, 256], strides = [1, 1]} : vector<4x256xf32> to vector<1x256xf32>
    %21 = vector.broadcast %19 : vector<16x1xf32> to vector<16x256xf32>
    %22 = vector.broadcast %20 : vector<1x256xf32> to vector<16x256xf32>
    %23 = arith.mulf %21, %22 : vector<16x256xf32>
    %24 = vector.broadcast %1 : vector<16x1xf32> to vector<16x256xf32>
    %25 = arith.addf %8, %24 : vector<16x256xf32>
    %26 = arith.addf %25, %13 : vector<16x256xf32>
    %27 = arith.addf %18, %23 : vector<16x256xf32>
    %28 = arith.addf %26, %27 : vector<16x256xf32>
    %29 = vector.extract_strided_slice %28 {offsets = [0, 0], sizes = [8, 256], strides = [1, 1]} : vector<16x256xf32> to vector<8x256xf32>
    %c0_6 = arith.constant 0 : index
    %c0_7 = arith.constant 0 : index
    %c0_8 = arith.constant 0 : index
    %30 = vector.load %arg5[%c0_6, %c0_7, %c0_8] : memref<1x8x256xf32, #tpu.memory_space<vmem>>, vector<1x8x256xf32>
    %31 = vector.shape_cast %30 : vector<1x8x256xf32> to vector<8x256xf32>
    %32 = vector.shape_cast %29 : vector<8x256xf32> to vector<1x8x256xf32>
    tpu.vector_store %arg5[%c0_6, %c0_7, %c0_8], %32 {strides = array<i32>} : memref<1x8x256xf32, #tpu.memory_space<vmem>>, vector<1x8x256xf32>,
    %33 = vector.extract_strided_slice %28 {offsets = [8, 0], sizes = [8, 256], strides = [1, 1]} : vector<16x256xf32> to vector<8x256xf32>
    %c0_9 = arith.constant 0 : index
    %c0_10 = arith.constant 0 : index
    %c0_11 = arith.constant 0 : index
    %34 = vector.load %arg6[%c0_9, %c0_10, %c0_11] : memref<1x8x256xf32, #tpu.memory_space<vmem>>, vector<1x8x256xf32>
    %35 = vector.shape_cast %34 : vector<1x8x256xf32> to vector<8x256xf32>
    %36 = vector.shape_cast %33 : vector<8x256xf32> to vector<1x8x256xf32>
    tpu.vector_store %arg6[%c0_9, %c0_10, %c0_11], %36 {strides = array<i32>} : memref<1x8x256xf32, #tpu.memory_space<vmem>>, vector<1x8x256xf32>,
    return
  }
  func.func @transform_0(%arg0: i32, %arg1: i32) -> (i32, i32, i32) {
    %c0_i32 = arith.constant 0 : i32
    %c0_i32_0 = arith.constant 0 : i32
    return %arg0, %c0_i32, %arg1 : i32, i32, i32
  }
  func.func @transform_1(%arg0: i32, %arg1: i32) -> (i32, i32) {
    %c0_i32 = arith.constant 0 : i32
    %c0_i32_0 = arith.constant 0 : i32
    %c0_i32_1 = arith.constant 0 : i32
    return %c0_i32, %c0_i32_0 : i32, i32
  }
  func.func @transform_2(%arg0: i32, %arg1: i32) -> (i32, i32) {
    %c0_i32 = arith.constant 0 : i32
    %c0_i32_0 = arith.constant 0 : i32
    %c0_i32_1 = arith.constant 0 : i32
    return %c0_i32, %c0_i32_0 : i32, i32
  }
  func.func @transform_3(%arg0: i32, %arg1: i32) -> (i32, i32, i32) {
    %c0_i32 = arith.constant 0 : i32
    %c0_i32_0 = arith.constant 0 : i32
    return %arg0, %c0_i32, %arg1 : i32, i32, i32
  }
  func.func @transform_4(%arg0: i32, %arg1: i32) -> (i32, i32, i32) {
    %c0_i32 = arith.constant 0 : i32
    %c0_i32_0 = arith.constant 0 : i32
    return %arg0, %c0_i32, %arg1 : i32, i32, i32
  }
}

</mosaic_0001>

<llo_original>
// kernel: tpu_custom_call.1
$region0: #{tpu_custom_call.1}
  #allocation0 [shape = 'u32[]', space=smem, size = 0x4, offset = 0x4, fixed_abs, tag = 'smem constant byte address 0x4 - core index']
  #allocation1 [shape = 'u32[144,128]{1,0:T(1,128)}', space=vmem, size = 0x12000, scoped, tag = 'internal scratch']
  %s0 = inlined_call_operand.vmem [shape: f32[2,4,256], index: 0, kind: input, shape index: {}]
  %s1 = inlined_call_operand.vmem [shape: f32[16,4], index: 1, kind: input, shape index: {}]
  %s2 = inlined_call_operand.vmem [shape: f32[16,1], index: 2, kind: input, shape index: {}]
  %s3 = inlined_call_operand.hbm [shape: f32[2,8,256], index: 3, kind: output, shape index: {0}]
  %s4 = inlined_call_operand.hbm [shape: f32[2,8,256], index: 4, kind: output, shape index: {1}]
  %5 = xla_tuple %s3, %s4
  %s6 = sld [smem:[#allocation0]]
  $region53: #{tpu_custom_call.1} parent=0
    _
  %s8 = ssub.s32 1, %s6
  %s9 = scalar_select 0, %s8, %s6
  $region1: #{tpu_custom_call.1} parent=0
    #allocation2 [shape = 'u8[16384]{0}', space=vmem, size = 0x4000, scoped, tag = 'output window, operand 0']
    #allocation3 [shape = 's32[2]{0}', space=sflag, size = 0x8, scoped, tag = 'scoped memory for tpu_custom_call.1']
    #allocation4 [shape = 'u8[16384]{0}', space=vmem, size = 0x4000, scoped, tag = 'output window, operand 1']
    #allocation5 [shape = 's32[2]{0}', space=sflag, size = 0x8, scoped, tag = 'scoped memory for tpu_custom_call.1']
    %10 = vsyncpa [#allocation3], 0
    %s11 = scalar_lea.sflag [#allocation3], 1
    %12 = vsyncpa %s11, 0
    %13 = vsyncpa [#allocation5], 0
    %s14 = scalar_lea.sflag [#allocation5], 1
    %15 = vsyncpa %s14, 0
    loop: start=0, step=1, limit=4
    $region2: #{tpu_custom_call.1} parent=1 // loop_pre_header
      _
    $region3: #{tpu_custom_call.1} parent=1 // loop_header
      %s17 = sphi 0, %s21
      %p18 = scmp.ge.s32.totalorder %s17, 4
      %s24 = sphi 0, %s36
      %s25 = sphi 0, %s32
      %s26 = sphi 0, %s24
      %s27 = sphi 0, %s25
      %s28 = sphi 0, %s26
      %s29 = sphi 0, %s27
      %s41 = sphi 0, %s43
      %s44 = sphi 0, %s41
      %s45 = sphi 0, %s44
      %s61 = sphi 0, %s45
      %s65 = sphi 0, %s65
      %s67 = sphi 0, %s65
      %s68 = sphi 0, %s67
      %s82 = sphi 0, %s68
      %s86 = sphi 0, %s86
      %s88 = sphi 0, %s86
      %s89 = sphi 0, %s88
      %s103 = sphi 0, %s89
      %s111 = sphi 0, %s113
      %s114 = sphi 0, %s111
      %s115 = sphi 0, %s114
      %s131 = sphi 0, %s115
      %s139 = sphi 0, %s141
      %s142 = sphi 0, %s139
      %s143 = sphi 0, %s142
      %s159 = sphi 0, %s143
    $region4: #{tpu_custom_call.1} parent=1 // loop_header_branch
      %20 = sbr.rel (%p18) target = $region8
    $region5: #{tpu_custom_call.1} parent=1 // loop_body
      %s22 = ssub.s32 %s17, 1
      %s23 = ssub.s32 %s17, 2
      %s30 = sadd.s32 1, %s25
      %p31 = scmp.ge.s32.totalorder %s30, 1
      %s32 = scalar_select %p31, 0, %s30
      %s33 = sadd.s32 1, %s24
      %s34 = scalar_select %p31, %s33, %s24
      %p35 = scmp.ge.s32.totalorder %s34, 2
      %s36 = scalar_select %p35, 0, %s34
      %s37 = ssub.s32 %s24, %s36
      %s38 = ssub.s32 %s25, %s32
      %s39 = sor.u32 %s37, %s38
      %p40 = scmp.eq.s32.totalorder %s39, 0
      %s42 = sadd.s32 %s41, 1
      %s43 = scalar_select %p40, %s41, %s42
      %p46 = pneg %p40
      %p47 = scmp.eq.s32.totalorder %s17, 1
      %p48 = por %p46, %p47
      %p49 = scmp.ne.s32.totalorder %s41, %s44
      %p50 = scmp.eq.s32.totalorder %s17, 0
      %p51 = por %p49, %p50
      %p52 = scmp.ne.s32.totalorder %s41, %s44
      %p53 = scmp.eq.s32.totalorder %s22, 1
      %p54 = por %p52, %p53
      %p55 = scmp.ne.s32.totalorder %s44, %s45
      %p56 = scmp.eq.s32.totalorder %s22, 0
      %p57 = por %p55, %p56
      %p58 = scmp.ne.s32.totalorder %s44, %s45
      %p59 = scmp.eq.s32.totalorder %s23, 1
      %p60 = por %p58, %p59
      %p62 = scmp.ne.s32.totalorder %s45, %s61
      %p63 = scmp.eq.s32.totalorder %s23, 0
      %p64 = por %p62, %p63
      %s66 = sadd.s32 %s65, 1
      %p69 = scmp.eq.s32.totalorder %s17, 1
      %p70 = scmp.ne.s32.totalorder %s65, %s67
      %p71 = scmp.eq.s32.totalorder %s17, 0
      %p72 = por %p70, %p71
      %p73 = scmp.ne.s32.totalorder %s65, %s67
      %p74 = scmp.eq.s32.totalorder %s22, 1
      %p75 = por %p73, %p74
      %p76 = scmp.ne.s32.totalorder %s67, %s68
      %p77 = scmp.eq.s32.totalorder %s22, 0
      %p78 = por %p76, %p77
      %p79 = scmp.ne.s32.totalorder %s67, %s68
      %p80 = scmp.eq.s32.totalorder %s23, 1
      %p81 = por %p79, %p80
      %p83 = scmp.ne.s32.totalorder %s68, %s82
      %p84 = scmp.eq.s32.totalorder %s23, 0
      %p85 = por %p83, %p84
      %s87 = sadd.s32 %s86, 1
      %p90 = scmp.eq.s32.totalorder %s17, 1
      %p91 = scmp.ne.s32.totalorder %s86, %s88
      %p92 = scmp.eq.s32.totalorder %s17, 0
      %p93 = por %p91, %p92
      %p94 = scmp.ne.s32.totalorder %s86, %s88
      %p95 = scmp.eq.s32.totalorder %s22, 1
      %p96 = por %p94, %p95
      %p97 = scmp.ne.s32.totalorder %s88, %s89
      %p98 = scmp.eq.s32.totalorder %s22, 0
      %p99 = por %p97, %p98
      %p100 = scmp.ne.s32.totalorder %s88, %s89
      %p101 = scmp.eq.s32.totalorder %s23, 1
      %p102 = por %p100, %p101
      %p104 = scmp.ne.s32.totalorder %s89, %s103
      %p105 = scmp.eq.s32.totalorder %s23, 0
      %p106 = por %p104, %p105
      %s107 = ssub.s32 %s24, %s36
      %s108 = ssub.s32 %s25, %s32
      %s109 = sor.u32 %s107, %s108
      %p110 = scmp.eq.s32.totalorder %s109, 0
      %s112 = sadd.s32 %s111, 1
      %s113 = scalar_select %p110, %s111, %s112
      %p116 = pneg %p110
      %p117 = scmp.eq.s32.totalorder %s17, 1
      %p118 = por %p116, %p117
      %p119 = scmp.ne.s32.totalorder %s111, %s114
      %p120 = scmp.eq.s32.totalorder %s17, 0
      %p121 = por %p119, %p120
      %p122 = scmp.ne.s32.totalorder %s111, %s114
      %p123 = scmp.eq.s32.totalorder %s22, 1
      %p124 = por %p122, %p123
      %p125 = scmp.ne.s32.totalorder %s114, %s115
      %p126 = scmp.eq.s32.totalorder %s22, 0
      %p127 = por %p125, %p126
      %p128 = scmp.ne.s32.totalorder %s114, %s115
      %p129 = scmp.eq.s32.totalorder %s23, 1
      %p130 = por %p128, %p129
      %p132 = scmp.ne.s32.totalorder %s115, %s131
      %p133 = scmp.eq.s32.totalorder %s23, 0
      %p134 = por %p132, %p133
      %s135 = ssub.s32 %s24, %s36
      %s136 = ssub.s32 %s25, %s32
      %s137 = sor.u32 %s135, %s136
      %p138 = scmp.eq.s32.totalorder %s137, 0
      %s140 = sadd.s32 %s139, 1
      %s141 = scalar_select %p138, %s139, %s140
      %p144 = pneg %p138
      %p145 = scmp.eq.s32.totalorder %s17, 1
      %p146 = por %p144, %p145
      %p147 = scmp.ne.s32.totalorder %s139, %s142
      %p148 = scmp.eq.s32.totalorder %s17, 0
      %p149 = por %p147, %p148
      %p150 = scmp.ne.s32.totalorder %s139, %s142
      %p151 = scmp.eq.s32.totalorder %s22, 1
      %p152 = por %p150, %p151
      %p153 = scmp.ne.s32.totalorder %s142, %s143
      %p154 = scmp.eq.s32.totalorder %s22, 0
      %p155 = por %p153, %p154
      %p156 = scmp.ne.s32.totalorder %s142, %s143
      %p157 = scmp.eq.s32.totalorder %s23, 1
      %p158 = por %p156, %p157
      %p160 = scmp.ne.s32.totalorder %s143, %s159
      %p161 = scmp.eq.s32.totalorder %s23, 0
      %p162 = por %p160, %p161
      %p163 = scmp.le.s32.totalorder 1, %s17
      %p164 = scmp.lt.s32.totalorder %s17, 3
      %p165 = pnand %p163, %p164
      %p166 = pneg %p165
      // Predicated region
      $region9: #{tpu_custom_call.1} parent=5 // pred_check
        _
      $region10: #{tpu_custom_call.1} parent=5 // pred_check_branch
        %168 = sbr.rel (%p165) target = $region12
      $region11: #{tpu_custom_call.1} parent=5 // pred_region
        %s169 = ssub.s32 %s17, 1
        // Predicated region
        $region13: #{tpu_custom_call.1} parent=11 // pred_check
          %p170 = pneg %p78
        $region14: #{tpu_custom_call.1} parent=11 // pred_check_branch
          %172 = sbr.rel (%p170) target = $region16
        $region15: #{tpu_custom_call.1} parent=11 // pred_region
          _
        $region16: #{tpu_custom_call.1} parent=11 // pred_fallthru
          _
        // Predicated region
        $region17: #{tpu_custom_call.1} parent=11 // pred_check
          %p173 = pneg %p99
        $region18: #{tpu_custom_call.1} parent=11 // pred_check_branch
          %175 = sbr.rel (%p173) target = $region20
        $region19: #{tpu_custom_call.1} parent=11 // pred_region
          _
        $region20: #{tpu_custom_call.1} parent=11 // pred_fallthru
          _
      $region12: #{tpu_custom_call.1} parent=5 // pred_fallthru
        _
      %p176 = scmp.lt.s32.totalorder %s17, 2
      // Predicated region
      $region21: #{tpu_custom_call.1} parent=5 // pred_check
        %p177 = pneg %p176
      $region22: #{tpu_custom_call.1} parent=5 // pred_check_branch
        %179 = sbr.rel (%p177) target = $region24
      $region23: #{tpu_custom_call.1} parent=5 // pred_region
        // Predicated region
        $region25: #{tpu_custom_call.1} parent=23 // pred_check
          %p180 = pneg %p51
        $region26: #{tpu_custom_call.1} parent=23 // pred_check_branch
          %182 = sbr.rel (%p180) target = $region28
        $region27: #{tpu_custom_call.1} parent=23 // pred_region
          %s183 = smul.u32 2, %s25
          %p184 = scmp.lt.s32.totalorder %s24, 1
          %s185 = scalar_select %p184, %s24, 1
          %p186 = scmp.lt.s32.totalorder %s183, 1
          %s187 = scalar_select %p186, %s183, 1
          %s188 = smul.addr %s185, 2
          %s189 = sadd.s32 %s187, %s188
          %s190 = smul.addr %s189, 4
          %s191 = scalar_lea.vmem %s0, %s190
          %s192 = smul.u32 2, %s25
        $region28: #{tpu_custom_call.1} parent=23 // pred_fallthru
          _
      $region24: #{tpu_custom_call.1} parent=5 // pred_fallthru
        _
      %p193 = scmp.le.s32.totalorder 1, %s17
      %p194 = scmp.lt.s32.totalorder %s17, 3
      %p195 = pnand %p193, %p194
      %p196 = pneg %p195
      // Predicated region
      $region29: #{tpu_custom_call.1} parent=5 // pred_check
        _
      $region30: #{tpu_custom_call.1} parent=5 // pred_check_branch
        %198 = sbr.rel (%p195) target = $region32
      $region31: #{tpu_custom_call.1} parent=5 // pred_region
        %s199 = ssub.s32 %s17, 1
        %s200 = smul.u32 2, %s27
        %p201 = scmp.lt.s32.totalorder %s26, 1
        %s202 = scalar_select %p201, %s26, 1
        %p203 = scmp.lt.s32.totalorder %s200, 1
        %s204 = scalar_select %p203, %s200, 1
        %s205 = smul.addr %s202, 2
        %s206 = sadd.s32 %s204, %s205
        %s207 = smul.addr %s206, 4
        %s208 = scalar_lea.vmem %s0, %s207
        %p209 = pneg %p57
        %p210 = pneg %p54
        %p211 = pneg %p78
        %p212 = pneg %p75
        %p213 = pneg %p99
        %p214 = pneg %p96
        %p215 = pneg %p127
        %p216 = pneg %p124
        %s217 = sand.u32 %s114, 1
        %s218 = scalar_lea.sflag [#allocation3], %s217
        %s219 = sand.u32 %s114, 1
        %s220 = smul.addr %s219, 16
        %s221 = scalar_lea.vmem [#allocation2], %s220
        %p222 = pneg %p155
        %p223 = pneg %p152
        %s224 = sand.u32 %s142, 1
        %s225 = scalar_lea.sflag [#allocation5], %s224
        %s226 = sand.u32 %s142, 1
        %s227 = smul.addr %s226, 16
        %s228 = scalar_lea.vmem [#allocation4], %s227
        %s229 = smul.u32 2, %s27
        %p230 = scmp.lt.s32.totalorder %s26, 1
        %s231 = scalar_select %p230, %s26, 1
        %p232 = scmp.lt.s32.totalorder %s229, 1
        %s233 = scalar_select %p232, %s229, 1
        %s234 = smul.addr %s231, 2
        %s235 = sadd.s32 %s233, %s234
        %s236 = smul.addr %s235, 4
        %s237 = scalar_lea.vmem %s0, %s236
        %s238 = smul.u32 2, %s27
        %s239 = smul.u32 2, %s27
        %s240 = smul.u32 2, %s27
        %v241 = vld [vmem:[%s1] sm:$0xff]
        %v242 = vld [vmem:[%s1 + $0x8] sm:$0xff]
        %v243 = vld [vmem:[%s2] sm:$0xff]
        %v244 = vld [vmem:[%s2 + $0x8] sm:$0xff]
        %v245 = vld [vmem:[%s237] sm:$0xff]
        %247 = vset.pattern.permute.xlu0 0
        %248 = vperm.xlu0 %247, %v241
        %v249 = vpop.permute.xlu0 %248
        %252 = vset.pattern.permute.xlu0 0
        %253 = vperm.xlu0 %252, %v242
        %v254 = vpop.permute.xlu0 %253
        %v257 = vlaneseq
        %v258 = vshrl.u32 %v257, 7
        %v259 = vsub.s32 0, %v258
        %v260 = vrot.slane %v245, %v259
        %v261 = vlaneseq
        %v262 = vshrl.u32 %v261, 7
        %v263 = vsub.s32 4, %v262
        %v264 = vrot.slane %v245, %v263
        %v267 = vlaneseq
        %v268 = vshrl.u32 %v267, 7
        %v269 = vsub.s32 0, %v268
        %v270 = vrot.slane %v260, %v269
        %v271 = vlaneseq
        %v272 = vshrl.u32 %v271, 7
        %v273 = vsub.s32 0, %v272
        %v274 = vrot.slane %v264, %v273
        %v275 = vmul.f32 %v249, %v270
        %v276 = vmul.f32 %v249, %v274
        %v277 = vmul.f32 %v254, %v270
        %v278 = vmul.f32 %v254, %v274
        %279 = vset.pattern.permute.xlu0 1
        %280 = vperm.xlu0 %279, %v241
        %v281 = vpop.permute.xlu0 %280
        %283 = vset.pattern.permute.xlu0 1
        %284 = vperm.xlu0 %283, %v242
        %v285 = vpop.permute.xlu0 %284
        %v287 = vlaneseq
        %v288 = vshrl.u32 %v287, 7
        %v289 = vsub.s32 1, %v288
        %v290 = vrot.slane %v245, %v289
        %v291 = vlaneseq
        %v292 = vshrl.u32 %v291, 7
        %v293 = vsub.s32 5, %v292
        %v294 = vrot.slane %v245, %v293
        %v297 = vlaneseq
        %v298 = vshrl.u32 %v297, 7
        %v299 = vsub.s32 1, %v298
        %v300 = vrot.slane %v290, %v299
        %v301 = vlaneseq
        %v302 = vshrl.u32 %v301, 7
        %v303 = vsub.s32 1, %v302
        %v304 = vrot.slane %v294, %v303
        %v305 = vmul.f32 %v281, %v300
        %v306 = vmul.f32 %v281, %v304
        %v307 = vmul.f32 %v285, %v300
        %v308 = vmul.f32 %v285, %v304
        %309 = vset.pattern.permute.xlu0 2
        %310 = vperm.xlu0 %309, %v241
        %v311 = vpop.permute.xlu0 %310
        %313 = vset.pattern.permute.xlu0 2
        %314 = vperm.xlu0 %313, %v242
        %v315 = vpop.permute.xlu0 %314
        %v317 = vlaneseq
        %v318 = vshrl.u32 %v317, 7
        %v319 = vsub.s32 2, %v318
        %v320 = vrot.slane %v245, %v319
        %v321 = vlaneseq
        %v322 = vshrl.u32 %v321, 7
        %v323 = vsub.s32 6, %v322
        %v324 = vrot.slane %v245, %v323
        %v327 = vlaneseq
        %v328 = vshrl.u32 %v327, 7
        %v329 = vsub.s32 2, %v328
        %v330 = vrot.slane %v320, %v329
        %v331 = vlaneseq
        %v332 = vshrl.u32 %v331, 7
        %v333 = vsub.s32 2, %v332
        %v334 = vrot.slane %v324, %v333
        %v335 = vmul.f32 %v311, %v330
        %v336 = vmul.f32 %v311, %v334
        %v337 = vmul.f32 %v315, %v330
        %v338 = vmul.f32 %v315, %v334
        %339 = vset.pattern.permute.xlu0 3
        %340 = vperm.xlu0 %339, %v241
        %v341 = vpop.permute.xlu0 %340
        %343 = vset.pattern.permute.xlu0 3
        %344 = vperm.xlu0 %343, %v242
        %v345 = vpop.permute.xlu0 %344
        %v347 = vlaneseq
        %v348 = vshrl.u32 %v347, 7
        %v349 = vsub.s32 3, %v348
        %v350 = vrot.slane %v245, %v349
        %v351 = vlaneseq
        %v352 = vshrl.u32 %v351, 7
        %v353 = vsub.s32 7, %v352
        %v354 = vrot.slane %v245, %v353
        %v357 = vlaneseq
        %v358 = vshrl.u32 %v357, 7
        %v359 = vsub.s32 3, %v358
        %v360 = vrot.slane %v350, %v359
        %v361 = vlaneseq
        %v362 = vshrl.u32 %v361, 7
        %v363 = vsub.s32 3, %v362
        %v364 = vrot.slane %v354, %v363
        %v365 = vmul.f32 %v341, %v360
        %v366 = vmul.f32 %v341, %v364
        %v367 = vmul.f32 %v345, %v360
        %v368 = vmul.f32 %v345, %v364
        %370 = vset.pattern.permute.xlu0 0
        %371 = vperm.xlu0 %370, %v243
        %v372 = vpop.permute.xlu0 %371
        %375 = vset.pattern.permute.xlu0 0
        %376 = vperm.xlu0 %375, %v244
        %v377 = vpop.permute.xlu0 %376
        %v379 = vadd.f32 %v275, %v372
        %v380 = vadd.f32 %v276, %v372
        %v381 = vadd.f32 %v277, %v377
        %v382 = vadd.f32 %v278, %v377
        %v383 = vadd.f32 %v379, %v305
        %v384 = vadd.f32 %v380, %v306
        %v385 = vadd.f32 %v381, %v307
        %v386 = vadd.f32 %v382, %v308
        %v387 = vadd.f32 %v335, %v365
        %v388 = vadd.f32 %v336, %v366
        %v389 = vadd.f32 %v337, %v367
        %v390 = vadd.f32 %v338, %v368
        %v391 = vadd.f32 %v383, %v387
        %v392 = vadd.f32 %v384, %v388
        %v393 = vadd.f32 %v385, %v389
        %v394 = vadd.f32 %v386, %v390
        %395 = vst [vmem:[%s221] sm:$0xff] %v391
        %396 = vst [vmem:[%s221 + $0x8] sm:$0xff] %v392
        %397 = vst [vmem:[%s228] sm:$0xff] %v393
        %398 = vst [vmem:[%s228 + $0x8] sm:$0xff] %v394
        %s399 = sand.u32 %s114, 1
        %s400 = scalar_lea.sflag [#allocation3], %s399
        %s401 = sand.u32 %s114, 1
        %s402 = smul.addr %s401, 16
        %s403 = scalar_lea.vmem [#allocation2], %s402
        %s404 = sand.u32 %s142, 1
        %s405 = scalar_lea.sflag [#allocation5], %s404
        %s406 = sand.u32 %s142, 1
        %s407 = smul.addr %s406, 16
        %s408 = scalar_lea.vmem [#allocation4], %s407
        // Predicated region
        $region33: #{tpu_custom_call.1} parent=31 // pred_check
          %p409 = pneg %p124
        $region34: #{tpu_custom_call.1} parent=31 // pred_check_branch
          %411 = sbr.rel (%p409) target = $region36
        $region35: #{tpu_custom_call.1} parent=31 // pred_region
          %s412 = smul.u32 2, %s27
          %s414 = ssub.s32 256, 256
          %415 = vsyncadd %s400, %s414
          %s416 = smul.addr %s26, 2
          %s417 = sadd.s32 %s412, %s416
          %s418 = smul.addr %s417, 128
          %s419 = scalar_lea.hbm %s3, %s418
          %s421 = sshll.u32 %s403, 4
          %s422 = int_to_ptr.vmem [resolvable:$true] %s421
          %424 = dma.vmem_to_hbm [thread:$0]  %s422, 256, %s419, %s400
        $region36: #{tpu_custom_call.1} parent=31 // pred_fallthru
          _
        // Predicated region
        $region37: #{tpu_custom_call.1} parent=31 // pred_check
          %p425 = pneg %p152
        $region38: #{tpu_custom_call.1} parent=31 // pred_check_branch
          %427 = sbr.rel (%p425) target = $region40
        $region39: #{tpu_custom_call.1} parent=31 // pred_region
          %s428 = smul.u32 2, %s27
          %s430 = ssub.s32 256, 256
          %431 = vsyncadd %s405, %s430
          %s432 = smul.addr %s26, 2
          %s433 = sadd.s32 %s428, %s432
          %s434 = smul.addr %s433, 128
          %s435 = scalar_lea.hbm %s4, %s434
          %s437 = sshll.u32 %s408, 4
          %s438 = int_to_ptr.vmem [resolvable:$true] %s437
          %440 = dma.vmem_to_hbm [thread:$0]  %s438, 256, %s435, %s405
        $region40: #{tpu_custom_call.1} parent=31 // pred_fallthru
          _
      $region32: #{tpu_custom_call.1} parent=5 // pred_fallthru
        _
      %p441 = scmp.le.s32.totalorder 2, %s17
      // Predicated region
      $region41: #{tpu_custom_call.1} parent=5 // pred_check
        %p442 = pneg %p441
      $region42: #{tpu_custom_call.1} parent=5 // pred_check_branch
        %444 = sbr.rel (%p442) target = $region44
      $region43: #{tpu_custom_call.1} parent=5 // pred_region
        %s445 = ssub.s32 %s17, 2
        // Predicated region
        $region45: #{tpu_custom_call.1} parent=43 // pred_check
          %p446 = pneg %p130
        $region46: #{tpu_custom_call.1} parent=43 // pred_check_branch
          %448 = sbr.rel (%p446) target = $region48
        $region47: #{tpu_custom_call.1} parent=43 // pred_region
          %s449 = sand.u32 %s115, 1
          %s450 = scalar_lea.sflag [#allocation3], %s449
          %s451 = sand.u32 %s115, 1
          %s452 = smul.addr %s451, 16
          %s453 = scalar_lea.vmem [#allocation2], %s452
          %454 = dma.done %s450, 256
        $region48: #{tpu_custom_call.1} parent=43 // pred_fallthru
          _
        // Predicated region
        $region49: #{tpu_custom_call.1} parent=43 // pred_check
          %p455 = pneg %p158
        $region50: #{tpu_custom_call.1} parent=43 // pred_check_branch
          %457 = sbr.rel (%p455) target = $region52
        $region51: #{tpu_custom_call.1} parent=43 // pred_region
          %s458 = sand.u32 %s143, 1
          %s459 = scalar_lea.sflag [#allocation5], %s458
          %s460 = sand.u32 %s143, 1
          %s461 = smul.addr %s460, 16
          %s462 = scalar_lea.vmem [#allocation4], %s461
          %463 = dma.done %s459, 256
        $region52: #{tpu_custom_call.1} parent=43 // pred_fallthru
          _
      $region44: #{tpu_custom_call.1} parent=5 // pred_fallthru
        _
    $region6: #{tpu_custom_call.1} parent=1 // loop_footer
      %s21 = sadd.s32 1, %s17
    $region7: #{tpu_custom_call.1} parent=1 // loop_footer_branch
      %16 = sbr.rel target = $region3
    $region8: #{tpu_custom_call.1} parent=1 // loop_exit
      _
    %464 = vsyncpa [#allocation3], 1
    %s465 = scalar_lea.sflag [#allocation3], 1
    %466 = vsyncpa %s465, 1
    %467 = vsyncpa [#allocation5], 1
    %s468 = scalar_lea.sflag [#allocation5], 1
    %469 = vsyncpa %s468, 1

</llo_original>
